<compile_context>
chip_gen: v6e
topology: v6e:2x2x1
jax: 0.10.0
libtpu: 0.0.40
codegen_flags: <defaults>
</compile_context>

<pallas_src>
import numpy as np

import jax
import jax.numpy as jnp
from jax.experimental import pallas as pl
from jax.experimental.pallas import tpu as pltpu


def _round_up(x: int, m: int) -> int:
    return ((x + m - 1) // m) * m


def _cdiv(a: int, b: int) -> int:
    return -(-a // b)


def _linear_interp_matrix(out_size: int, in_size: int) -> np.ndarray:
    """(out_size, in_size) matrix reproducing torch bilinear
    (align_corners=False) along one axis: y = W @ x.  Built host-side."""
    if in_size == 1:
        return np.ones((out_size, 1), np.float32)
    scale = in_size / out_size
    dst = np.arange(out_size, dtype=np.float64)
    src = (dst + 0.5) * scale - 0.5
    # Clamping src to [0, in-1] is algebraically identical to PyTorch's
    # index-clamp formulation (x1 = min(x0+1, in-1), negative src -> 0).
    src = np.clip(src, 0.0, float(in_size - 1))
    x0 = np.floor(src).astype(np.int64)
    x1 = np.minimum(x0 + 1, in_size - 1)
    frac = (src - x0).astype(np.float32)
    w = np.zeros((out_size, in_size), np.float32)
    rows = np.arange(out_size)
    np.add.at(w, (rows, x0), 1.0 - frac)
    np.add.at(w, (rows, x1), frac)
    return w


def build_bilinear_weight(in_hw, out_hw) -> jnp.ndarray:
    """Combined separable kernel as a single matmul operand of shape
    (H_in*W_in, H_out*W_out), row-major (H, W) flattening on both sides.
    Returned in bf16 when that is lossless, else f32."""
    wh = _linear_interp_matrix(out_hw[0], in_hw[0])   # (H_out, H_in)
    ww = _linear_interp_matrix(out_hw[1], in_hw[1])   # (W_out, W_in)
    w_full_t = np.kron(wh, ww).T                      # (H_in*W_in, H_out*W_out)
    w_bf16 = w_full_t.astype(jnp.bfloat16)
    if np.array_equal(w_bf16.astype(np.float32), w_full_t):
        return jnp.asarray(w_bf16)                    # exact -> half the bytes
    return jnp.asarray(w_full_t)


def _interp_kernel(x_ref, w_ref, o_ref):
    # x_ref: (TB, K)   lane-dense flattened input rows
    # w_ref: (K, TN)   interpolation weight block (bf16 or f32), resident
    # o_ref: (TB, TN)  lane-dense flattened output rows
    x = x_ref[...].astype(jnp.float32)
    w = w_ref[...].astype(jnp.float32)
    o_ref[...] = jnp.dot(x, w, preferred_element_type=jnp.float32).astype(o_ref.dtype)


def interpolate_bilinear(x: jnp.ndarray, size, *, weight=None,
                         block_rows: int = 1024,
                         vmem_budget_bytes: int = 24 * 1024 * 1024) -> jnp.ndarray:
    """Equivalent of torch.nn.functional.interpolate(x, size=size, mode='bilinear').

    x: (N, C, H_in, W_in). Returns (N, C, H_out, W_out) in x.dtype.
    """
    N, C, H_in, W_in = x.shape
    H_out, W_out = size
    if weight is None:
        weight = build_bilinear_weight((H_in, W_in), (H_out, W_out))

    K = H_in * W_in
    M_out = H_out * W_out
    NC = N * C
    NC8 = _round_up(NC, 8)

    x_bytes = x.dtype.itemsize
    w_bytes = weight.dtype.itemsize

    # Output-column tile: full width unless the dense kron weight would blow
    # the VMEM budget (only for large spatial sizes).
    # TODO(synk): for very large H_in*W_in a separable two-matmul path (plus a
    # K-tiling axis) would beat the dense kron; not needed at this module's sizes.
    weight_budget = vmem_budget_bytes // 2
    if K * M_out * w_bytes <= weight_budget or M_out % 128 != 0:
        TN = M_out
    else:
        TN = int(min(M_out, max(128, (weight_budget // (K * w_bytes)) // 128 * 128)))

    # Row block: as large as the VMEM budget allows, but capped so there are
    # >=2 grid steps whenever possible (megacore on v7x).
    per_row_bytes = 2 * (K + TN) * x_bytes            # double-buffered x + out
    avail = max(vmem_budget_bytes - K * TN * w_bytes, per_row_bytes * 8)
    tb_vmem = max(8, (avail // per_row_bytes) // 8 * 8)
    TB = min(block_rows, NC8, tb_vmem)
    if NC8 >= 16:
        TB = min(TB, _round_up(_cdiv(NC8, 2), 8))
    TB = max(8, TB)

    grid_rows = _cdiv(NC8, TB)
    grid_cols = _cdiv(M_out, TN)

    x2d = x.reshape(NC, K)
    if NC8 != NC:
        # Pad only to the 8-row sublane granule; ragged last row-block is
        # handled by the cdiv grid (padded output rows are sliced off below).
        x2d = jnp.pad(x2d, ((0, NC8 - NC), (0, 0)))

    vmem_estimate = (2 * TB * K * x_bytes
                     + 2 * TB * TN * x_bytes
                     + K * TN * w_bytes)
    vmem_limit = int(min(64 * 1024 * 1024,
                         max(32 * 1024 * 1024, vmem_estimate + 8 * 1024 * 1024)))

    cost = pl.CostEstimate(
        flops=2 * NC8 * K * M_out,
        transcendentals=0,
        bytes_accessed=int(NC8 * K * x_bytes * grid_cols
                           + K * M_out * w_bytes
                           + NC8 * M_out * x_bytes),
    )

    # Single-buffer the weight when its block never changes (fetched once);
    # keep the default depth when column tiling makes it change per step.
    w_pipeline = pl.Buffered(1) if grid_cols == 1 else pl.Buffered(2)

    out2d = pl.pallas_call(
        _interp_kernel,
        out_shape=jax.ShapeDtypeStruct((NC8, M_out), x.dtype),
        grid=(grid_rows, grid_cols),
        in_specs=[
            pl.BlockSpec((TB, K), lambda i, j: (i, 0)),
            pl.BlockSpec((K, TN), lambda i, j: (0, j), pipeline_mode=w_pipeline),
        ],
        out_specs=pl.BlockSpec((TB, TN), lambda i, j: (i, j)),
        compiler_params=pltpu.CompilerParams(
            dimension_semantics=("parallel", "parallel"),
            vmem_limit_bytes=vmem_limit,
        ),
        cost_estimate=cost,
    )(x2d, weight)

    if NC8 != NC:
        out2d = out2d[:NC]
    return out2d.reshape(N, C, H_out, W_out)


class Interpolate:
    """JAX/Pallas port of the PyTorch Interpolate module (bilinear)."""

    def __init__(self, size, mode):
        assert mode == "bilinear", "only bilinear implemented here"
        # TODO(synk): other modes ('nearest', 'bicubic', ...) not implemented.
        self.size = tuple(size)
        self.mode = mode
        self._weight_cache = {}   # keyed by input spatial shape

    def _weight(self, in_hw):
        w = self._weight_cache.get(in_hw)
        if w is None:
            w = build_bilinear_weight(in_hw, self.size)
            self._weight_cache[in_hw] = w
        return w

    def __call__(self, x):
        in_hw = (x.shape[2], x.shape[3])
        return interpolate_bilinear(x, self.size, weight=self._weight(in_hw))


if __name__ == "__main__":
    key = jax.random.PRNGKey(0)
    N, C, H, W = 2, 4, 16, 16
    size = (32, 32)

    x = jax.random.normal(key, (N, C, H, W), dtype=jnp.float32)

    module = Interpolate(size=size, mode="bilinear")
    out = jax.block_until_ready(module(x))
    # Second call exercises the cached (hoisted) weight path.
    out = jax.block_until_ready(module(x))

    # Pure-JAX reference (same interpolation matrices, f32 einsum).
    wh = jnp.asarray(_linear_interp_matrix(size[0], H))
    ww = jnp.asarray(_linear_interp_matrix(size[1], W))
    ref = jnp.einsum("oh,nchw,pw->ncop", wh, x, ww)
    assert out.shape == (N, C, size[0], size[1])
    assert jnp.allclose(out, ref, atol=1e-5, rtol=1e-5)

    print("KERNEL_OK")
</pallas_src>

<mosaic_0001>
module attributes {stable_mosaic.version = 11 : i64} {
  func.func @_interp_kernel(%arg0: i32, %arg1: i32, %arg2: memref<8x256xf32, #tpu.memory_space<vmem>>, %arg3: memref<256x1024xbf16, #tpu.memory_space<vmem>>, %arg4: memref<8x1024xf32, #tpu.memory_space<vmem>>) attributes {dimension_semantics = [#tpu.dimension_semantics<parallel>, #tpu.dimension_semantics<parallel>], iteration_bounds = array<i64: 1, 1>, scalar_prefetch = 0 : i64, scratch_operands = 0 : i64, tpu.core_type = #tpu.core_type<tc>, window_params = [{transform_indices = @transform_0, window_bounds = array<i64: 8, 256>}, {pipeline_mode = #tpu.pipeline_mode<synchronous>, transform_indices = @transform_1, window_bounds = array<i64: 256, 1024>}, {transform_indices = @transform_2, window_bounds = array<i64: 8, 1024>}]} {
    %c0 = arith.constant 0 : index
    %c0_0 = arith.constant 0 : index
    %0 = vector.load %arg2[%c0, %c0_0] : memref<8x256xf32, #tpu.memory_space<vmem>>, vector<8x256xf32>
    %c0_1 = arith.constant 0 : index
    %c0_2 = arith.constant 0 : index
    %1 = vector.load %arg3[%c0_1, %c0_2] : memref<256x1024xbf16, #tpu.memory_space<vmem>>, vector<256x1024xbf16>
    %2 = arith.extf %1 : vector<256x1024xbf16> to vector<256x1024xf32>
    %cst = arith.constant dense<0.000000e+00> : vector<8x1024xf32>
    %3 = tpu.matmul %0, %2, %cst {dimension_numbers = #tpu.dot_dimension_numbers<[1], [0], [0], [1], [0, 0, 1, 1], [], []>} : vector<8x256xf32>, vector<256x1024xf32>, vector<8x1024xf32> -> vector<8x1024xf32>
    %c0_3 = arith.constant 0 : index
    %c0_4 = arith.constant 0 : index
    %4 = vector.load %arg4[%c0_3, %c0_4] : memref<8x1024xf32, #tpu.memory_space<vmem>>, vector<8x1024xf32>
    tpu.vector_store %arg4[%c0_3, %c0_4], %3 {strides = array<i32>} : memref<8x1024xf32, #tpu.memory_space<vmem>>, vector<8x1024xf32>,
    return
  }
  func.func @transform_0(%arg0: i32, %arg1: i32) -> (i32, i32) {
    %c0_i32 = arith.constant 0 : i32
    %c0_i32_0 = arith.constant 0 : i32
    return %arg0, %c0_i32 : i32, i32
  }
  func.func @transform_1(%arg0: i32, %arg1: i32) -> (i32, i32) {
    %c0_i32 = arith.constant 0 : i32
    %c0_i32_0 = arith.constant 0 : i32
    return %c0_i32, %arg1 : i32, i32
  }
  func.func @transform_2(%arg0: i32, %arg1: i32) -> (i32, i32) {
    %c0_i32 = arith.constant 0 : i32
    return %arg0, %arg1 : i32, i32
  }
}

</mosaic_0001>

<llo_original>
// kernel: tpu_custom_call.1
$region0: #{tpu_custom_call.1}
  #allocation0 [shape = 'u32[]', space=smem, size = 0x4, offset = 0x4, fixed_abs, tag = 'smem constant byte address 0x4 - core index']
  #allocation1 [shape = 'u32[144,128]{1,0:T(1,128)}', space=vmem, size = 0x12000, scoped, tag = 'internal scratch']
  %s0 = inlined_call_operand.hbm [shape: f32[8,256], index: 0, kind: input, shape index: {}]
  %s1 = inlined_call_operand.hbm [shape: bf16[256,1024], index: 1, kind: input, shape index: {}]
  %s2 = inlined_call_operand.hbm [shape: f32[8,1024], index: 2, kind: output, shape index: {}]
  %s3 = sld [smem:[#allocation0]]
  $region26: #{tpu_custom_call.1} parent=0
    _
  %s5 = ssub.s32 1, %s3
  %s6 = scalar_select 0, %s5, %s3
  $region1: #{tpu_custom_call.1} parent=0
    #allocation2 [shape = 'u8[8192]{0}', space=vmem, size = 0x2000, scoped, tag = 'input window, operand 0, single buffered']
    #allocation3 [shape = 's32[1]{0}', space=sflag, size = 0x4, scoped, tag = 'scoped memory for tpu_custom_call.1']
    #allocation4 [shape = 's32[1]{0}', space=sflag, size = 0x4, scoped, tag = 'scoped memory for tpu_custom_call.1']
    #allocation5 [shape = 'u8[524288]{0}', space=vmem, size = 0x80000, scoped, tag = 'input window, operand 1, single buffered']
    #allocation6 [shape = 's32[1]{0}', space=sflag, size = 0x4, scoped, tag = 'scoped memory for tpu_custom_call.1']
    #allocation7 [shape = 'u8[32768]{0}', space=vmem, size = 0x8000, scoped, tag = 'output window, operand 0, single buffered']
    %7 = vsyncpa [#allocation3], 0
    %8 = vsyncpa [#allocation6], 0
    %9 = vsyncpa [#allocation4], 0
    // Predicated region
    $region2: #{tpu_custom_call.1} parent=1 // pred_check
      _
    $region3: #{tpu_custom_call.1} parent=1 // pred_check_branch
      %11 = sbr.rel (0) target = $region5
    $region4: #{tpu_custom_call.1} parent=1 // pred_region
      %s13 = ssub.s32 256, 256
      %14 = vsyncadd [#allocation3], %s13
      %s16 = sshll.u32 [#allocation2], 4
      %s17 = int_to_ptr.vmem [resolvable:$true] %s16
      %19 = dma.hbm_to_vmem [thread:$0]  %s0, 256, %s17, [#allocation3]
    $region5: #{tpu_custom_call.1} parent=1 // pred_fallthru
      _
    // Predicated region
    $region6: #{tpu_custom_call.1} parent=1 // pred_check
      _
    $region7: #{tpu_custom_call.1} parent=1 // pred_check_branch
      %21 = sbr.rel (0) target = $region9
    $region8: #{tpu_custom_call.1} parent=1 // pred_region
      %s23 = ssub.s32 16384, 16384
      %24 = vsyncadd [#allocation6], %s23
      %s25 = sshll.u32 [#allocation5], 4
      %s26 = int_to_ptr.vmem [resolvable:$true] %s25
      %31 = dma.hbm_to_vmem [thread:$0]  %s1, 16384, %s26, [#allocation6], 512, 512, 32
    $region9: #{tpu_custom_call.1} parent=1 // pred_fallthru
      _
    // Predicated region
    $region10: #{tpu_custom_call.1} parent=1 // pred_check
      _
    $region11: #{tpu_custom_call.1} parent=1 // pred_check_branch
      %33 = sbr.rel (0) target = $region13
    $region12: #{tpu_custom_call.1} parent=1 // pred_region
      %34 = dma.done [#allocation3], 256
    $region13: #{tpu_custom_call.1} parent=1 // pred_fallthru
      _
    // Predicated region
    $region14: #{tpu_custom_call.1} parent=1 // pred_check
      _
    $region15: #{tpu_custom_call.1} parent=1 // pred_check_branch
      %36 = sbr.rel (0) target = $region17
    $region16: #{tpu_custom_call.1} parent=1 // pred_region
      %37 = dma.done [#allocation6], 16384
    $region17: #{tpu_custom_call.1} parent=1 // pred_fallthru
      _
    %v38 = vld [vmem:[#allocation2] sm:$0xff]
    %v39 = vld [vmem:[#allocation2 + $0x8] sm:$0xff]
    %v40 = vld [vmem:[#allocation5] sm:$0xff]
    %v41 = vld [vmem:[#allocation5 + $0x8] sm:$0xff]
    %v42 = vld [vmem:[#allocation5 + $0x10] sm:$0xff]
    %v43 = vld [vmem:[#allocation5 + $0x18] sm:$0xff]
    %v44 = vld [vmem:[#allocation5 + $0x20] sm:$0xff]
    %v45 = vld [vmem:[#allocation5 + $0x28] sm:$0xff]
    %v46 = vld [vmem:[#allocation5 + $0x30] sm:$0xff]
    %v47 = vld [vmem:[#allocation5 + $0x38] sm:$0xff]
    %v48 = vld [vmem:[#allocation5 + $0x40] sm:$0xff]
    %v49 = vld [vmem:[#allocation5 + $0x48] sm:$0xff]
    %v50 = vld [vmem:[#allocation5 + $0x50] sm:$0xff]
    %v51 = vld [vmem:[#allocation5 + $0x58] sm:$0xff]
    %v52 = vld [vmem:[#allocation5 + $0x60] sm:$0xff]
    %v53 = vld [vmem:[#allocation5 + $0x68] sm:$0xff]
    %v54 = vld [vmem:[#allocation5 + $0x70] sm:$0xff]
    %v55 = vld [vmem:[#allocation5 + $0x78] sm:$0xff]
    %v56 = vld [vmem:[#allocation5 + $0x80] sm:$0xff]
    %v57 = vld [vmem:[#allocation5 + $0x88] sm:$0xff]
    %v58 = vld [vmem:[#allocation5 + $0x90] sm:$0xff]
    %v59 = vld [vmem:[#allocation5 + $0x98] sm:$0xff]
    %v60 = vld [vmem:[#allocation5 + $0xa0] sm:$0xff]
    %v61 = vld [vmem:[#allocation5 + $0xa8] sm:$0xff]
    %v62 = vld [vmem:[#allocation5 + $0xb0] sm:$0xff]
    %v63 = vld [vmem:[#allocation5 + $0xb8] sm:$0xff]
    %v64 = vld [vmem:[#allocation5 + $0xc0] sm:$0xff]
    %v65 = vld [vmem:[#allocation5 + $0xc8] sm:$0xff]
    %v66 = vld [vmem:[#allocation5 + $0xd0] sm:$0xff]
    %v67 = vld [vmem:[#allocation5 + $0xd8] sm:$0xff]
    %v68 = vld [vmem:[#allocation5 + $0xe0] sm:$0xff]
    %v69 = vld [vmem:[#allocation5 + $0xe8] sm:$0xff]
    %v70 = vld [vmem:[#allocation5 + $0xf0] sm:$0xff]
    %v71 = vld [vmem:[#allocation5 + $0xf8] sm:$0xff]
    %v72 = vld [vmem:[#allocation5 + $0x100] sm:$0xff]
    %v73 = vld [vmem:[#allocation5 + $0x108] sm:$0xff]
    %v74 = vld [vmem:[#allocation5 + $0x110] sm:$0xff]
    %v75 = vld [vmem:[#allocation5 + $0x118] sm:$0xff]
    %v76 = vld [vmem:[#allocation5 + $0x120] sm:$0xff]
    %v77 = vld [vmem:[#allocation5 + $0x128] sm:$0xff]
    %v78 = vld [vmem:[#allocation5 + $0x130] sm:$0xff]
    %v79 = vld [vmem:[#allocation5 + $0x138] sm:$0xff]
    %v80 = vld [vmem:[#allocation5 + $0x140] sm:$0xff]
    %v81 = vld [vmem:[#allocation5 + $0x148] sm:$0xff]
    %v82 = vld [vmem:[#allocation5 + $0x150] sm:$0xff]
    %v83 = vld [vmem:[#allocation5 + $0x158] sm:$0xff]
    %v84 = vld [vmem:[#allocation5 + $0x160] sm:$0xff]
    %v85 = vld [vmem:[#allocation5 + $0x168] sm:$0xff]
    %v86 = vld [vmem:[#allocation5 + $0x170] sm:$0xff]
    %v87 = vld [vmem:[#allocation5 + $0x178] sm:$0xff]
    %v88 = vld [vmem:[#allocation5 + $0x180] sm:$0xff]
    %v89 = vld [vmem:[#allocation5 + $0x188] sm:$0xff]
    %v90 = vld [vmem:[#allocation5 + $0x190] sm:$0xff]
    %v91 = vld [vmem:[#allocation5 + $0x198] sm:$0xff]
    %v92 = vld [vmem:[#allocation5 + $0x1a0] sm:$0xff]
    %v93 = vld [vmem:[#allocation5 + $0x1a8] sm:$0xff]
    %v94 = vld [vmem:[#allocation5 + $0x1b0] sm:$0xff]
    %v95 = vld [vmem:[#allocation5 + $0x1b8] sm:$0xff]
    %v96 = vld [vmem:[#allocation5 + $0x1c0] sm:$0xff]
    %v97 = vld [vmem:[#allocation5 + $0x1c8] sm:$0xff]
    %v98 = vld [vmem:[#allocation5 + $0x1d0] sm:$0xff]
    %v99 = vld [vmem:[#allocation5 + $0x1d8] sm:$0xff]
    %v100 = vld [vmem:[#allocation5 + $0x1e0] sm:$0xff]
    %v101 = vld [vmem:[#allocation5 + $0x1e8] sm:$0xff]
    %v102 = vld [vmem:[#allocation5 + $0x1f0] sm:$0xff]
    %v103 = vld [vmem:[#allocation5 + $0x1f8] sm:$0xff]
    %v104 = vld [vmem:[#allocation5 + $0x200] sm:$0xff]
    %v105 = vld [vmem:[#allocation5 + $0x208] sm:$0xff]
    %v106 = vld [vmem:[#allocation5 + $0x210] sm:$0xff]
    %v107 = vld [vmem:[#allocation5 + $0x218] sm:$0xff]
    %v108 = vld [vmem:[#allocation5 + $0x220] sm:$0xff]
    %v109 = vld [vmem:[#allocation5 + $0x228] sm:$0xff]
    %v110 = vld [vmem:[#allocation5 + $0x230] sm:$0xff]
    %v111 = vld [vmem:[#allocation5 + $0x238] sm:$0xff]
    %v112 = vld [vmem:[#allocation5 + $0x240] sm:$0xff]
    %v113 = vld [vmem:[#allocation5 + $0x248] sm:$0xff]
    %v114 = vld [vmem:[#allocation5 + $0x250] sm:$0xff]
    %v115 = vld [vmem:[#allocation5 + $0x258] sm:$0xff]
    %v116 = vld [vmem:[#allocation5 + $0x260] sm:$0xff]
    %v117 = vld [vmem:[#allocation5 + $0x268] sm:$0xff]
    %v118 = vld [vmem:[#allocation5 + $0x270] sm:$0xff]
    %v119 = vld [vmem:[#allocation5 + $0x278] sm:$0xff]
    %v120 = vld [vmem:[#allocation5 + $0x280] sm:$0xff]
    %v121 = vld [vmem:[#allocation5 + $0x288] sm:$0xff]
    %v122 = vld [vmem:[#allocation5 + $0x290] sm:$0xff]
    %v123 = vld [vmem:[#allocation5 + $0x298] sm:$0xff]
    %v124 = vld [vmem:[#allocation5 + $0x2a0] sm:$0xff]
    %v125 = vld [vmem:[#allocation5 + $0x2a8] sm:$0xff]
    %v126 = vld [vmem:[#allocation5 + $0x2b0] sm:$0xff]
    %v127 = vld [vmem:[#allocation5 + $0x2b8] sm:$0xff]
    %v128 = vld [vmem:[#allocation5 + $0x2c0] sm:$0xff]
    %v129 = vld [vmem:[#allocation5 + $0x2c8] sm:$0xff]
    %v130 = vld [vmem:[#allocation5 + $0x2d0] sm:$0xff]
    %v131 = vld [vmem:[#allocation5 + $0x2d8] sm:$0xff]
    %v132 = vld [vmem:[#allocation5 + $0x2e0] sm:$0xff]
    %v133 = vld [vmem:[#allocation5 + $0x2e8] sm:$0xff]
    %v134 = vld [vmem:[#allocation5 + $0x2f0] sm:$0xff]
    %v135 = vld [vmem:[#allocation5 + $0x2f8] sm:$0xff]
    %v136 = vld [vmem:[#allocation5 + $0x300] sm:$0xff]
    %v137 = vld [vmem:[#allocation5 + $0x308] sm:$0xff]
    %v138 = vld [vmem:[#allocation5 + $0x310] sm:$0xff]
    %v139 = vld [vmem:[#allocation5 + $0x318] sm:$0xff]
    %v140 = vld [vmem:[#allocation5 + $0x320] sm:$0xff]
    %v141 = vld [vmem:[#allocation5 + $0x328] sm:$0xff]
    %v142 = vld [vmem:[#allocation5 + $0x330] sm:$0xff]
    %v143 = vld [vmem:[#allocation5 + $0x338] sm:$0xff]
    %v144 = vld [vmem:[#allocation5 + $0x340] sm:$0xff]
    %v145 = vld [vmem:[#allocation5 + $0x348] sm:$0xff]
    %v146 = vld [vmem:[#allocation5 + $0x350] sm:$0xff]
    %v147 = vld [vmem:[#allocation5 + $0x358] sm:$0xff]
    %v148 = vld [vmem:[#allocation5 + $0x360] sm:$0xff]
    %v149 = vld [vmem:[#allocation5 + $0x368] sm:$0xff]
    %v150 = vld [vmem:[#allocation5 + $0x370] sm:$0xff]
    %v151 = vld [vmem:[#allocation5 + $0x378] sm:$0xff]
    %v152 = vld [vmem:[#allocation5 + $0x380] sm:$0xff]
    %v153 = vld [vmem:[#allocation5 + $0x388] sm:$0xff]
    %v154 = vld [vmem:[#allocation5 + $0x390] sm:$0xff]
    %v155 = vld [vmem:[#allocation5 + $0x398] sm:$0xff]
    %v156 = vld [vmem:[#allocation5 + $0x3a0] sm:$0xff]
    %v157 = vld [vmem:[#allocation5 + $0x3a8] sm:$0xff]
    %v158 = vld [vmem:[#allocation5 + $0x3b0] sm:$0xff]
    %v159 = vld [vmem:[#allocation5 + $0x3b8] sm:$0xff]
    %v160 = vld [vmem:[#allocation5 + $0x3c0] sm:$0xff]
    %v161 = vld [vmem:[#allocation5 + $0x3c8] sm:$0xff]
    %v162 = vld [vmem:[#allocation5 + $0x3d0] sm:$0xff]
    %v163 = vld [vmem:[#allocation5 + $0x3d8] sm:$0xff]
    %v164 = vld [vmem:[#allocation5 + $0x3e0] sm:$0xff]
    %v165 = vld [vmem:[#allocation5 + $0x3e8] sm:$0xff]
    %v166 = vld [vmem:[#allocation5 + $0x3f0] sm:$0xff]
    %v167 = vld [vmem:[#allocation5 + $0x3f8] sm:$0xff]
    %v168 = vunpack.c.l.bf16 %v40
    %v169 = vunpack.c.h.bf16 %v40
    %v170 = vunpack.c.l.bf16 %v41
    %v171 = vunpack.c.h.bf16 %v41
    %v172 = vunpack.c.l.bf16 %v42
    %v173 = vunpack.c.h.bf16 %v42
    %v174 = vunpack.c.l.bf16 %v43
    %v175 = vunpack.c.h.bf16 %v43
    %v176 = vunpack.c.l.bf16 %v44
    %v177 = vunpack.c.h.bf16 %v44
    %v178 = vunpack.c.l.bf16 %v45
    %v179 = vunpack.c.h.bf16 %v45
    %v180 = vunpack.c.l.bf16 %v46
    %v181 = vunpack.c.h.bf16 %v46
    %v182 = vunpack.c.l.bf16 %v47
    %v183 = vunpack.c.h.bf16 %v47
    %v184 = vunpack.c.l.bf16 %v48
    %v185 = vunpack.c.h.bf16 %v48
    %v186 = vunpack.c.l.bf16 %v49
    %v187 = vunpack.c.h.bf16 %v49
    %v188 = vunpack.c.l.bf16 %v50
    %v189 = vunpack.c.h.bf16 %v50
    %v190 = vunpack.c.l.bf16 %v51
    %v191 = vunpack.c.h.bf16 %v51
    %v192 = vunpack.c.l.bf16 %v52
    %v193 = vunpack.c.h.bf16 %v52
    %v194 = vunpack.c.l.bf16 %v53
    %v195 = vunpack.c.h.bf16 %v53
    %v196 = vunpack.c.l.bf16 %v54
    %v197 = vunpack.c.h.bf16 %v54
    %v198 = vunpack.c.l.bf16 %v55
    %v199 = vunpack.c.h.bf16 %v55
    %v200 = vunpack.c.l.bf16 %v56
    %v201 = vunpack.c.h.bf16 %v56
    %v202 = vunpack.c.l.bf16 %v57
    %v203 = vunpack.c.h.bf16 %v57
    %v204 = vunpack.c.l.bf16 %v58
    %v205 = vunpack.c.h.bf16 %v58
    %v206 = vunpack.c.l.bf16 %v59
    %v207 = vunpack.c.h.bf16 %v59
    %v208 = vunpack.c.l.bf16 %v60
    %v209 = vunpack.c.h.bf16 %v60
    %v210 = vunpack.c.l.bf16 %v61
    %v211 = vunpack.c.h.bf16 %v61
    %v212 = vunpack.c.l.bf16 %v62
    %v213 = vunpack.c.h.bf16 %v62
    %v214 = vunpack.c.l.bf16 %v63
    %v215 = vunpack.c.h.bf16 %v63
    %v216 = vunpack.c.l.bf16 %v64
    %v217 = vunpack.c.h.bf16 %v64
    %v218 = vunpack.c.l.bf16 %v65
    %v219 = vunpack.c.h.bf16 %v65
    %v220 = vunpack.c.l.bf16 %v66
    %v221 = vunpack.c.h.bf16 %v66
    %v222 = vunpack.c.l.bf16 %v67
    %v223 = vunpack.c.h.bf16 %v67
    %v224 = vunpack.c.l.bf16 %v68
    %v225 = vunpack.c.h.bf16 %v68
    %v226 = vunpack.c.l.bf16 %v69
    %v227 = vunpack.c.h.bf16 %v69
    %v228 = vunpack.c.l.bf16 %v70
    %v229 = vunpack.c.h.bf16 %v70
    %v230 = vunpack.c.l.bf16 %v71
    %v231 = vunpack.c.h.bf16 %v71
    %v232 = vunpack.c.l.bf16 %v72
    %v233 = vunpack.c.h.bf16 %v72
    %v234 = vunpack.c.l.bf16 %v73
    %v235 = vunpack.c.h.bf16 %v73
    %v236 = vunpack.c.l.bf16 %v74
    %v237 = vunpack.c.h.bf16 %v74
    %v238 = vunpack.c.l.bf16 %v75
    %v239 = vunpack.c.h.bf16 %v75
    %v240 = vunpack.c.l.bf16 %v76
    %v241 = vunpack.c.h.bf16 %v76
    %v242 = vunpack.c.l.bf16 %v77
    %v243 = vunpack.c.h.bf16 %v77
    %v244 = vunpack.c.l.bf16 %v78
    %v245 = vunpack.c.h.bf16 %v78
    %v246 = vunpack.c.l.bf16 %v79
    %v247 = vunpack.c.h.bf16 %v79
    %v248 = vunpack.c.l.bf16 %v80
    %v249 = vunpack.c.h.bf16 %v80
    %v250 = vunpack.c.l.bf16 %v81
    %v251 = vunpack.c.h.bf16 %v81
    %v252 = vunpack.c.l.bf16 %v82
    %v253 = vunpack.c.h.bf16 %v82
    %v254 = vunpack.c.l.bf16 %v83
    %v255 = vunpack.c.h.bf16 %v83
    %v256 = vunpack.c.l.bf16 %v84
    %v257 = vunpack.c.h.bf16 %v84
    %v258 = vunpack.c.l.bf16 %v85
    %v259 = vunpack.c.h.bf16 %v85
    %v260 = vunpack.c.l.bf16 %v86
    %v261 = vunpack.c.h.bf16 %v86
    %v262 = vunpack.c.l.bf16 %v87
    %v263 = vunpack.c.h.bf16 %v87
    %v264 = vunpack.c.l.bf16 %v88
    %v265 = vunpack.c.h.bf16 %v88
    %v266 = vunpack.c.l.bf16 %v89
    %v267 = vunpack.c.h.bf16 %v89
    %v268 = vunpack.c.l.bf16 %v90
    %v269 = vunpack.c.h.bf16 %v90
    %v270 = vunpack.c.l.bf16 %v91
    %v271 = vunpack.c.h.bf16 %v91
    %v272 = vunpack.c.l.bf16 %v92
    %v273 = vunpack.c.h.bf16 %v92
    %v274 = vunpack.c.l.bf16 %v93
    %v275 = vunpack.c.h.bf16 %v93
    %v276 = vunpack.c.l.bf16 %v94
    %v277 = vunpack.c.h.bf16 %v94
    %v278 = vunpack.c.l.bf16 %v95
    %v279 = vunpack.c.h.bf16 %v95
    %v280 = vunpack.c.l.bf16 %v96
    %v281 = vunpack.c.h.bf16 %v96
    %v282 = vunpack.c.l.bf16 %v97
    %v283 = vunpack.c.h.bf16 %v97
    %v284 = vunpack.c.l.bf16 %v98
    %v285 = vunpack.c.h.bf16 %v98
    %v286 = vunpack.c.l.bf16 %v99
    %v287 = vunpack.c.h.bf16 %v99
    %v288 = vunpack.c.l.bf16 %v100
    %v289 = vunpack.c.h.bf16 %v100
    %v290 = vunpack.c.l.bf16 %v101
    %v291 = vunpack.c.h.bf16 %v101
    %v292 = vunpack.c.l.bf16 %v102
    %v293 = vunpack.c.h.bf16 %v102
    %v294 = vunpack.c.l.bf16 %v103
    %v295 = vunpack.c.h.bf16 %v103
    %v296 = vunpack.c.l.bf16 %v104
    %v297 = vunpack.c.h.bf16 %v104
    %v298 = vunpack.c.l.bf16 %v105
    %v299 = vunpack.c.h.bf16 %v105
    %v300 = vunpack.c.l.bf16 %v106
    %v301 = vunpack.c.h.bf16 %v106
    %v302 = vunpack.c.l.bf16 %v107
    %v303 = vunpack.c.h.bf16 %v107
    %v304 = vunpack.c.l.bf16 %v108
    %v305 = vunpack.c.h.bf16 %v108
    %v306 = vunpack.c.l.bf16 %v109
    %v307 = vunpack.c.h.bf16 %v109
    %v308 = vunpack.c.l.bf16 %v110
    %v309 = vunpack.c.h.bf16 %v110
    %v310 = vunpack.c.l.bf16 %v111
    %v311 = vunpack.c.h.bf16 %v111
    %v312 = vunpack.c.l.bf16 %v112
    %v313 = vunpack.c.h.bf16 %v112
    %v314 = vunpack.c.l.bf16 %v113
    %v315 = vunpack.c.h.bf16 %v113
    %v316 = vunpack.c.l.bf16 %v114
    %v317 = vunpack.c.h.bf16 %v114
    %v318 = vunpack.c.l.bf16 %v115
    %v319 = vunpack.c.h.bf16 %v115
    %v320 = vunpack.c.l.bf16 %v116
    %v321 = vunpack.c.h.bf16 %v116
    %v322 = vunpack.c.l.bf16 %v117
    %v323 = vunpack.c.h.bf16 %v117
    %v324 = vunpack.c.l.bf16 %v118
    %v325 = vunpack.c.h.bf16 %v118
    %v326 = vunpack.c.l.bf16 %v119
    %v327 = vunpack.c.h.bf16 %v119
    %v328 = vunpack.c.l.bf16 %v120
    %v329 = vunpack.c.h.bf16 %v120
    %v330 = vunpack.c.l.bf16 %v121
    %v331 = vunpack.c.h.bf16 %v121
    %v332 = vunpack.c.l.bf16 %v122
    %v333 = vunpack.c.h.bf16 %v122
    %v334 = vunpack.c.l.bf16 %v123
    %v335 = vunpack.c.h.bf16 %v123
    %v336 = vunpack.c.l.bf16 %v124
    %v337 = vunpack.c.h.bf16 %v124
    %v338 = vunpack.c.l.bf16 %v125
    %v339 = vunpack.c.h.bf16 %v125
    %v340 = vunpack.c.l.bf16 %v126
    %v341 = vunpack.c.h.bf16 %v126
    %v342 = vunpack.c.l.bf16 %v127
    %v343 = vunpack.c.h.bf16 %v127
    %v344 = vunpack.c.l.bf16 %v128
    %v345 = vunpack.c.h.bf16 %v128
    %v346 = vunpack.c.l.bf16 %v129
    %v347 = vunpack.c.h.bf16 %v129
    %v348 = vunpack.c.l.bf16 %v130
    %v349 = vunpack.c.h.bf16 %v130
    %v350 = vunpack.c.l.bf16 %v131
    %v351 = vunpack.c.h.bf16 %v131
    %v352 = vunpack.c.l.bf16 %v132
    %v353 = vunpack.c.h.bf16 %v132
    %v354 = vunpack.c.l.bf16 %v133
    %v355 = vunpack.c.h.bf16 %v133
    %v356 = vunpack.c.l.bf16 %v134
    %v357 = vunpack.c.h.bf16 %v134
    %v358 = vunpack.c.l.bf16 %v135
    %v359 = vunpack.c.h.bf16 %v135
    %v360 = vunpack.c.l.bf16 %v136
    %v361 = vunpack.c.h.bf16 %v136
    %v362 = vunpack.c.l.bf16 %v137
    %v363 = vunpack.c.h.bf16 %v137
    %v364 = vunpack.c.l.bf16 %v138
    %v365 = vunpack.c.h.bf16 %v138
    %v366 = vunpack.c.l.bf16 %v139
    %v367 = vunpack.c.h.bf16 %v139
    %v368 = vunpack.c.l.bf16 %v140
    %v369 = vunpack.c.h.bf16 %v140
    %v370 = vunpack.c.l.bf16 %v141
    %v371 = vunpack.c.h.bf16 %v141
    %v372 = vunpack.c.l.bf16 %v142
    %v373 = vunpack.c.h.bf16 %v142
    %v374 = vunpack.c.l.bf16 %v143
    %v375 = vunpack.c.h.bf16 %v143
    %v376 = vunpack.c.l.bf16 %v144
    %v377 = vunpack.c.h.bf16 %v144
    %v378 = vunpack.c.l.bf16 %v145
    %v379 = vunpack.c.h.bf16 %v145
    %v380 = vunpack.c.l.bf16 %v146
    %v381 = vunpack.c.h.bf16 %v146
    %v382 = vunpack.c.l.bf16 %v147
    %v383 = vunpack.c.h.bf16 %v147
    %v384 = vunpack.c.l.bf16 %v148
    %v385 = vunpack.c.h.bf16 %v148
    %v386 = vunpack.c.l.bf16 %v149
    %v387 = vunpack.c.h.bf16 %v149
    %v388 = vunpack.c.l.bf16 %v150
    %v389 = vunpack.c.h.bf16 %v150
    %v390 = vunpack.c.l.bf16 %v151
    %v391 = vunpack.c.h.bf16 %v151
    %v392 = vunpack.c.l.bf16 %v152
    %v393 = vunpack.c.h.bf16 %v152
    %v394 = vunpack.c.l.bf16 %v153
    %v395 = vunpack.c.h.bf16 %v153
    %v396 = vunpack.c.l.bf16 %v154
    %v397 = vunpack.c.h.bf16 %v154
    %v398 = vunpack.c.l.bf16 %v155
    %v399 = vunpack.c.h.bf16 %v155
    %v400 = vunpack.c.l.bf16 %v156
    %v401 = vunpack.c.h.bf16 %v156
    %v402 = vunpack.c.l.bf16 %v157
    %v403 = vunpack.c.h.bf16 %v157
    %v404 = vunpack.c.l.bf16 %v158
    %v405 = vunpack.c.h.bf16 %v158
    %v406 = vunpack.c.l.bf16 %v159
    %v407 = vunpack.c.h.bf16 %v159
    %v408 = vunpack.c.l.bf16 %v160
    %v409 = vunpack.c.h.bf16 %v160
    %v410 = vunpack.c.l.bf16 %v161
    %v411 = vunpack.c.h.bf16 %v161
    %v412 = vunpack.c.l.bf16 %v162
    %v413 = vunpack.c.h.bf16 %v162
    %v414 = vunpack.c.l.bf16 %v163
    %v415 = vunpack.c.h.bf16 %v163
    %v416 = vunpack.c.l.bf16 %v164
    %v417 = vunpack.c.h.bf16 %v164
    %v418 = vunpack.c.l.bf16 %v165
    %v419 = vunpack.c.h.bf16 %v165
    %v420 = vunpack.c.l.bf16 %v166
    %v421 = vunpack.c.h.bf16 %v166
    %v422 = vunpack.c.l.bf16 %v167
    %v423 = vunpack.c.h.bf16 %v167
    %424 = vmatprep.subr.mxu0 %v289
    %425 = vmatpush1.msra.mxu0 %v288
    %426 = vmatprep.subr.mxu0 %v281
    %427 = vmatpush1.msra.mxu0 %v280
    %428 = vmatprep.subr.mxu0 %v273
    %429 = vmatpush1.msra.mxu0 %v272
    %430 = vmatprep.subr.mxu0 %v265
    %431 = vmatpush1.msra.mxu0 %v264
    %432 = vmatprep.subr.mxu0 %v257
    %433 = vmatpush1.msra.mxu0 %v256
    %434 = vmatprep.subr.mxu0 %v249
    %435 = vmatpush1.msra.mxu0 %v248
    %436 = vmatprep.subr.mxu0 %v241
    %437 = vmatpush1.msra.mxu0 %v240
    %438 = vmatprep.subr.mxu0 %v233
    %439 = vmatpush1.msra.mxu0 %v232
    %440 = vmatprep.subr.mxu0 %v225
    %441 = vmatpush1.msra.mxu0 %v224
    %442 = vmatprep.subr.mxu0 %v217
    %443 = vmatpush1.msra.mxu0 %v216
    %444 = vmatprep.subr.mxu0 %v209
    %445 = vmatpush1.msra.mxu0 %v208
    %446 = vmatprep.subr.mxu0 %v201
    %447 = vmatpush1.msra.mxu0 %v200
    %448 = vmatprep.subr.mxu0 %v193
    %449 = vmatpush1.msra.mxu0 %v192
    %450 = vmatprep.subr.mxu0 %v185
    %451 = vmatpush1.msra.mxu0 %v184
    %452 = vmatprep.subr.mxu0 %v177
    %453 = vmatpush1.msra.mxu0 %v176
    %454 = vmatprep.subr.mxu0 %v169
    %455 = vmatpush1.msra.mxu0 %v168
    %456 = vmatprep.subr.mxu0 %v417
    %457 = vmatpush2.msra.mxu0 %v416
    %458 = vmatprep.subr.mxu0 %v409
    %459 = vmatpush2.msra.mxu0 %v408
    %460 = vmatprep.subr.mxu0 %v401
    %461 = vmatpush2.msra.mxu0 %v400
    %462 = vmatprep.subr.mxu0 %v393
    %463 = vmatpush2.msra.mxu0 %v392
    %464 = vmatprep.subr.mxu0 %v385
    %465 = vmatpush2.msra.mxu0 %v384
    %466 = vmatprep.subr.mxu0 %v377
    %467 = vmatpush2.msra.mxu0 %v376
    %468 = vmatprep.subr.mxu0 %v369
    %469 = vmatpush2.msra.mxu0 %v368
    %470 = vmatprep.subr.mxu0 %v361
    %471 = vmatpush2.msra.mxu0 %v360
    %472 = vmatprep.subr.mxu0 %v353
    %473 = vmatpush2.msra.mxu0 %v352
    %474 = vmatprep.subr.mxu0 %v345
    %475 = vmatpush2.msra.mxu0 %v344
    %476 = vmatprep.subr.mxu0 %v337
    %477 = vmatpush2.msra.mxu0 %v336
    %478 = vmatprep.subr.mxu0 %v329
    %479 = vmatpush2.msra.mxu0 %v328
    %480 = vmatprep.subr.mxu0 %v321
    %481 = vmatpush2.msra.mxu0 %v320
    %482 = vmatprep.subr.mxu0 %v313
    %483 = vmatpush2.msra.mxu0 %v312
    %484 = vmatprep.subr.mxu0 %v305
    %485 = vmatpush2.msra.mxu0 %v304
    %486 = vmatprep.subr.mxu0 %v297
    %487 = vmatpush2.msra.mxu0 %v296
    %488 = vmatprep.mubr.f32.mxu0 %v39
    %489 = vmatmul.mubr.f32.gmra.mxu0 %v38
    %v490 = vpop.f32.mrf.mxu0
    %v491 = vadd.f32 0.0, %v490
    %v492 = vpop.f32.mrf.mxu0
    %v493 = vadd.f32 0.0, %v492
    %494 = vdwg.mxu0
    %495 = vmatprep.subr.mxu0 %v291
    %496 = vmatpush1.msra.mxu0 %v290
    %497 = vmatprep.subr.mxu0 %v283
    %498 = vmatpush1.msra.mxu0 %v282
    %499 = vmatprep.subr.mxu0 %v275
    %500 = vmatpush1.msra.mxu0 %v274
    %501 = vmatprep.subr.mxu0 %v267
    %502 = vmatpush1.msra.mxu0 %v266
    %503 = vmatprep.subr.mxu0 %v259
    %504 = vmatpush1.msra.mxu0 %v258
    %505 = vmatprep.subr.mxu0 %v251
    %506 = vmatpush1.msra.mxu0 %v250
    %507 = vmatprep.subr.mxu0 %v243
    %508 = vmatpush1.msra.mxu0 %v242
    %509 = vmatprep.subr.mxu0 %v235
    %510 = vmatpush1.msra.mxu0 %v234
    %511 = vmatprep.subr.mxu0 %v227
    %512 = vmatpush1.msra.mxu0 %v226
    %513 = vmatprep.subr.mxu0 %v219
    %514 = vmatpush1.msra.mxu0 %v218
    %515 = vmatprep.subr.mxu0 %v211
    %516 = vmatpush1.msra.mxu0 %v210
    %517 = vmatprep.subr.mxu0 %v203
    %518 = vmatpush1.msra.mxu0 %v202
    %519 = vmatprep.subr.mxu0 %v195
    %520 = vmatpush1.msra.mxu0 %v194
    %521 = vmatprep.subr.mxu0 %v187
    %522 = vmatpush1.msra.mxu0 %v186
    %523 = vmatprep.subr.mxu0 %v179
    %524 = vmatpush1.msra.mxu0 %v178
    %525 = vmatprep.subr.mxu0 %v171
    %526 = vmatpush1.msra.mxu0 %v170
    %527 = vmatprep.subr.mxu0 %v419
    %528 = vmatpush2.msra.mxu0 %v418
    %529 = vmatprep.subr.mxu0 %v411
    %530 = vmatpush2.msra.mxu0 %v410
    %531 = vmatprep.subr.mxu0 %v403
    %532 = vmatpush2.msra.mxu0 %v402
    %533 = vmatprep.subr.mxu0 %v395
    %534 = vmatpush2.msra.mxu0 %v394
    %535 = vmatprep.subr.mxu0 %v387
    %536 = vmatpush2.msra.mxu0 %v386
    %537 = vmatprep.subr.mxu0 %v379
    %538 = vmatpush2.msra.mxu0 %v378
    %539 = vmatprep.subr.mxu0 %v371
    %540 = vmatpush2.msra.mxu0 %v370
    %541 = vmatprep.subr.mxu0 %v363
    %542 = vmatpush2.msra.mxu0 %v362
    %543 = vmatprep.subr.mxu0 %v355
    %544 = vmatpush2.msra.mxu0 %v354
    %545 = vmatprep.subr.mxu0 %v347
    %546 = vmatpush2.msra.mxu0 %v346
    %547 = vmatprep.subr.mxu0 %v339
    %548 = vmatpush2.msra.mxu0 %v338
    %549 = vmatprep.subr.mxu0 %v331
    %550 = vmatpush2.msra.mxu0 %v330
    %551 = vmatprep.subr.mxu0 %v323
    %552 = vmatpush2.msra.mxu0 %v322
    %553 = vmatprep.subr.mxu0 %v315
    %554 = vmatpush2.msra.mxu0 %v314
    %555 = vmatprep.subr.mxu0 %v307
    %556 = vmatpush2.msra.mxu0 %v306
    %557 = vmatprep.subr.mxu0 %v299
    %558 = vmatpush2.msra.mxu0 %v298
    %559 = vmatprep.mubr.f32.mxu0 %v39
    %560 = vmatmul.mubr.f32.gmra.mxu0 %v38
    %v561 = vpop.f32.mrf.mxu0
    %v562 = vadd.f32 0.0, %v561
    %v563 = vpop.f32.mrf.mxu0
    %v564 = vadd.f32 0.0, %v563
    %565 = vdwg.mxu0
    %566 = vmatprep.subr.mxu0 %v293
    %567 = vmatpush1.msra.mxu0 %v292
    %568 = vmatprep.subr.mxu0 %v285
    %569 = vmatpush1.msra.mxu0 %v284
    %570 = vmatprep.subr.mxu0 %v277
    %571 = vmatpush1.msra.mxu0 %v276
    %572 = vmatprep.subr.mxu0 %v269
    %573 = vmatpush1.msra.mxu0 %v268
    %574 = vmatprep.subr.mxu0 %v261
    %575 = vmatpush1.msra.mxu0 %v260
    %576 = vmatprep.subr.mxu0 %v253
    %577 = vmatpush1.msra.mxu0 %v252
    %578 = vmatprep.subr.mxu0 %v245
    %579 = vmatpush1.msra.mxu0 %v244
    %580 = vmatprep.subr.mxu0 %v237
    %581 = vmatpush1.msra.mxu0 %v236
    %582 = vmatprep.subr.mxu0 %v229
    %583 = vmatpush1.msra.mxu0 %v228
    %584 = vmatprep.subr.mxu0 %v221
    %585 = vmatpush1.msra.mxu0 %v220
    %586 = vmatprep.subr.mxu0 %v213
    %587 = vmatpush1.msra.mxu0 %v212
    %588 = vmatprep.subr.mxu0 %v205
    %589 = vmatpush1.msra.mxu0 %v204
    %590 = vmatprep.subr.mxu0 %v197
    %591 = vmatpush1.msra.mxu0 %v196
    %592 = vmatprep.subr.mxu0 %v189
    %593 = vmatpush1.msra.mxu0 %v188
    %594 = vmatprep.subr.mxu0 %v181
    %595 = vmatpush1.msra.mxu0 %v180
    %596 = vmatprep.subr.mxu0 %v173
    %597 = vmatpush1.msra.mxu0 %v172
    %598 = vmatprep.subr.mxu0 %v421
    %599 = vmatpush2.msra.mxu0 %v420
    %600 = vmatprep.subr.mxu0 %v413
    %601 = vmatpush2.msra.mxu0 %v412
    %602 = vmatprep.subr.mxu0 %v405
    %603 = vmatpush2.msra.mxu0 %v404
    %604 = vmatprep.subr.mxu0 %v397
    %605 = vmatpush2.msra.mxu0 %v396
    %606 = vmatprep.subr.mxu0 %v389
    %607 = vmatpush2.msra.mxu0 %v388
    %608 = vmatprep.subr.mxu0 %v381
    %609 = vmatpush2.msra.mxu0 %v380
    %610 = vmatprep.subr.mxu0 %v373
    %611 = vmatpush2.msra.mxu0 %v372
    %612 = vmatprep.subr.mxu0 %v365
    %613 = vmatpush2.msra.mxu0 %v364
    %614 = vmatprep.subr.mxu0 %v357
    %615 = vmatpush2.msra.mxu0 %v356
    %616 = vmatprep.subr.mxu0 %v349
    %617 = vmatpush2.msra.mxu0 %v348
    %618 = vmatprep.subr.mxu0 %v341
    %619 = vmatpush2.msra.mxu0 %v340
    %620 = vmatprep.subr.mxu0 %v333
    %621 = vmatpush2.msra.mxu0 %v332
    %622 = vmatprep.subr.mxu0 %v325
    %623 = vmatpush2.msra.mxu0 %v324
    %624 = vmatprep.subr.mxu0 %v317
    %625 = vmatpush2.msra.mxu0 %v316
    %626 = vmatprep.subr.mxu0 %v309
    %627 = vmatpush2.msra.mxu0 %v308
    %628 = vmatprep.subr.mxu0 %v301
    %629 = vmatpush2.msra.mxu0 %v300
    %630 = vmatprep.mubr.f32.mxu0 %v39
    %631 = vmatmul.mubr.f32.gmra.mxu0 %v38
    %v632 = vpop.f32.mrf.mxu0
    %v633 = vadd.f32 0.0, %v632
    %v634 = vpop.f32.mrf.mxu0
    %v635 = vadd.f32 0.0, %v634
    %636 = vdwg.mxu0
    %637 = vmatprep.subr.mxu0 %v295
    %638 = vmatpush1.msra.mxu0 %v294
    %639 = vmatprep.subr.mxu0 %v287
    %640 = vmatpush1.msra.mxu0 %v286
    %641 = vmatprep.subr.mxu0 %v279
    %642 = vmatpush1.msra.mxu0 %v278
    %643 = vmatprep.subr.mxu0 %v271
    %644 = vmatpush1.msra.mxu0 %v270
    %645 = vmatprep.subr.mxu0 %v263
    %646 = vmatpush1.msra.mxu0 %v262
    %647 = vmatprep.subr.mxu0 %v255
    %648 = vmatpush1.msra.mxu0 %v254
    %649 = vmatprep.subr.mxu0 %v247
    %650 = vmatpush1.msra.mxu0 %v246
    %651 = vmatprep.subr.mxu0 %v239
    %652 = vmatpush1.msra.mxu0 %v238
    %653 = vmatprep.subr.mxu0 %v231
    %654 = vmatpush1.msra.mxu0 %v230
    %655 = vmatprep.subr.mxu0 %v223
    %656 = vmatpush1.msra.mxu0 %v222
    %657 = vmatprep.subr.mxu0 %v215
    %658 = vmatpush1.msra.mxu0 %v214
    %659 = vmatprep.subr.mxu0 %v207
    %660 = vmatpush1.msra.mxu0 %v206
    %661 = vmatprep.subr.mxu0 %v199
    %662 = vmatpush1.msra.mxu0 %v198
    %663 = vmatprep.subr.mxu0 %v191
    %664 = vmatpush1.msra.mxu0 %v190
    %665 = vmatprep.subr.mxu0 %v183
    %666 = vmatpush1.msra.mxu0 %v182
    %667 = vmatprep.subr.mxu0 %v175
    %668 = vmatpush1.msra.mxu0 %v174
    %669 = vmatprep.subr.mxu0 %v423
    %670 = vmatpush2.msra.mxu0 %v422
    %671 = vmatprep.subr.mxu0 %v415
    %672 = vmatpush2.msra.mxu0 %v414
    %673 = vmatprep.subr.mxu0 %v407
    %674 = vmatpush2.msra.mxu0 %v406
    %675 = vmatprep.subr.mxu0 %v399
    %676 = vmatpush2.msra.mxu0 %v398
    %677 = vmatprep.subr.mxu0 %v391
    %678 = vmatpush2.msra.mxu0 %v390
    %679 = vmatprep.subr.mxu0 %v383
    %680 = vmatpush2.msra.mxu0 %v382
    %681 = vmatprep.subr.mxu0 %v375
    %682 = vmatpush2.msra.mxu0 %v374
    %683 = vmatprep.subr.mxu0 %v367
    %684 = vmatpush2.msra.mxu0 %v366
    %685 = vmatprep.subr.mxu0 %v359
    %686 = vmatpush2.msra.mxu0 %v358
    %687 = vmatprep.subr.mxu0 %v351
    %688 = vmatpush2.msra.mxu0 %v350
    %689 = vmatprep.subr.mxu0 %v343
    %690 = vmatpush2.msra.mxu0 %v342
    %691 = vmatprep.subr.mxu0 %v335
    %692 = vmatpush2.msra.mxu0 %v334
    %693 = vmatprep.subr.mxu0 %v327
    %694 = vmatpush2.msra.mxu0 %v326
    %695 = vmatprep.subr.mxu0 %v319
    %696 = vmatpush2.msra.mxu0 %v318
    %697 = vmatprep.subr.mxu0 %v311
    %698 = vmatpush2.msra.mxu0 %v310
    %699 = vmatprep.subr.mxu0 %v303
    %700 = vmatpush2.msra.mxu0 %v302
    %701 = vmatprep.mubr.f32.mxu0 %v39
    %702 = vmatmul.mubr.f32.gmra.mxu0 %v38
    %v703 = vpop.f32.mrf.mxu0
    %v704 = vadd.f32 0.0, %v703
    %v705 = vpop.f32.mrf.mxu0
    %v706 = vadd.f32 0.0, %v705
    %707 = vdwg.mxu0
    %708 = vst [vmem:[#allocation7] sm:$0xff] %v491
    %709 = vst [vmem:[#allocation7 + $0x8] sm:$0xff] %v493
    %710 = vst [vmem:[#allocation7 + $0x10] sm:$0xff] %v562
    %711 = vst [vmem:[#allocation7 + $0x18] sm:$0xff] %v564
    %712 = vst [vmem:[#allocation7 + $0x20] sm:$0xff] %v633
    %713 = vst [vmem:[#allocation7 + $0x28] sm:$0xff] %v635
    %714 = vst [vmem:[#allocation7 + $0x30] sm:$0xff] %v704
    %715 = vst [vmem:[#allocation7 + $0x38] sm:$0xff] %v706
    // Predicated region
    $region18: #{tpu_custom_call.1} parent=1 // pred_check
      _
    $region19: #{tpu_custom_call.1} parent=1 // pred_check_branch
      %717 = sbr.rel (0) target = $region21
    $region20: #{tpu_custom_call.1} parent=1 // pred_region
      %s719 = ssub.s32 1024, 1024
      %720 = vsyncadd [#allocation4], %s719
      %s722 = sshll.u32 [#allocation7], 4
      %s723 = int_to_ptr.vmem [resolvable:$true] %s722
      %725 = dma.vmem_to_hbm [thread:$0]  %s723, 1024, %s2, [#allocation4]
    $region21: #{tpu_custom_call.1} parent=1 // pred_fallthru
      _
    // Predicated region
    $region22: #{tpu_custom_call.1} parent=1 // pred_check
      _
    $region23: #{tpu_custom_call.1} parent=1 // pred_check_branch
      %727 = sbr.rel (0) target = $region25
    $region24: #{tpu_custom_call.1} parent=1 // pred_region
      %728 = dma.done [#allocation4], 1024
    $region25: #{tpu_custom_call.1} parent=1 // pred_fallthru
      _
    %729 = vsyncpa [#allocation3], 1
    %730 = vsyncpa [#allocation6], 1
    %731 = vsyncpa [#allocation4], 1

</llo_original>
